<compile_context>
chip_gen: v7x
topology: tpu7x:2x2x1
jax: 0.10.0
libtpu: 0.0.40
codegen_flags: <defaults>
</compile_context>

<pallas_src>
import functools

import jax
import jax.numpy as jnp
import numpy as np
from jax import lax
from jax.experimental import pallas as pl
from jax.experimental.pallas import tpu as pltpu

_LN_EPS = 1e-5


# ----------------------------------------------------------------------------
# Shared tiny value-MLP (1x1 conv -> LayerNorm([Cm,1,1]) -> ReLU -> 1x1 conv)
# operating on a (C, 1) context column; returns (C, 1).
# ----------------------------------------------------------------------------
def _value_mlp(ctx, w1, b1, g, bt, w2, b2):
    z = jnp.dot(w1, ctx, preferred_element_type=jnp.float32) + b1      # (Cm,1)
    mu = jnp.mean(z, axis=0, keepdims=True)
    var = jnp.mean(jnp.square(z - mu), axis=0, keepdims=True)
    zn = (z - mu) * lax.rsqrt(var + _LN_EPS) * g + bt
    zn = jnp.maximum(zn, 0.0)
    return jnp.dot(w2, zn, preferred_element_type=jnp.float32) + b2     # (C,1)


# ----------------------------------------------------------------------------
# Fused kernel: whole image resident in VMEM, 1 read + 1 write of x.
#   x_ref: (1, C, HW)   o_ref: (1, C, HW)
# ----------------------------------------------------------------------------
def _gcb_fused_kernel(x_ref, wk_ref, bk_ref, w1_ref, b1_ref, g_ref, bt_ref,
                      w2_ref, b2_ref, o_ref):
    x = x_ref[0].astype(jnp.float32)                                   # (C, HW)
    # key 1x1 conv as an M=1 MXU matmul: (1,C) @ (C,HW) -> (1,HW)
    logits = jnp.dot(wk_ref[...], x,
                     preferred_element_type=jnp.float32) + bk_ref[...]
    m = jnp.max(logits, axis=-1, keepdims=True)                        # (1,1)
    p = jnp.exp(logits - m)                                            # (1,HW)
    denom = jnp.sum(p, axis=-1, keepdims=True)                         # (1,1)
    # softmax-weighted global pooling on the MXU: (C,HW) x (1,HW) -> (C,1)
    ctx = lax.dot_general(x, p, (((1,), (1,)), ((), ())),
                          preferred_element_type=jnp.float32) / denom
    v = _value_mlp(ctx, w1_ref[...], b1_ref[...], g_ref[...], bt_ref[...],
                   w2_ref[...], b2_ref[...])                           # (C,1)
    o_ref[0] = (x + v).astype(o_ref.dtype)


# ----------------------------------------------------------------------------
# Strip path, pass 1: online softmax + context pooling + value MLP.
#   x_ref: (1, C, T) strip, v_ref: (1, C, 1) per-batch value vector.
#   Scratch: m (1,1) running max, l (1,1) running denom, acc (C,1) weighted sum.
# ----------------------------------------------------------------------------
def _gcb_ctx_kernel(x_ref, wk_ref, bk_ref, w1_ref, b1_ref, g_ref, bt_ref,
                    w2_ref, b2_ref, v_ref, m_ref, l_ref, acc_ref,
                    *, hw, strip, needs_mask):
    s = pl.program_id(1)

    @pl.when(s == 0)
    def _():
        m_ref[...] = jnp.full(m_ref.shape, -jnp.inf, m_ref.dtype)
        l_ref[...] = jnp.zeros(l_ref.shape, l_ref.dtype)
        acc_ref[...] = jnp.zeros(acc_ref.shape, acc_ref.dtype)

    x = x_ref[0].astype(jnp.float32)                                   # (C, T)
    logits = jnp.dot(wk_ref[...], x,
                     preferred_element_type=jnp.float32) + bk_ref[...]  # (1, T)

    if needs_mask:  # static: only emitted when HW % T != 0 (masked tail strip)
        lane = lax.broadcasted_iota(jnp.int32, (1, strip), 1)
        valid = (s * strip + lane) < hw                                # (1, T)
        logits = jnp.where(valid, logits, -jnp.inf)
        x = jnp.where(valid, x, 0.0)

    # online-softmax accumulation across strips
    m_new = jnp.maximum(m_ref[...], jnp.max(logits, axis=-1, keepdims=True))
    alpha = jnp.exp(m_ref[...] - m_new)                                # (1, 1)
    p = jnp.exp(logits - m_new)                                        # (1, T)
    l_ref[...] = alpha * l_ref[...] + jnp.sum(p, axis=-1, keepdims=True)
    acc_ref[...] = alpha * acc_ref[...] + lax.dot_general(
        x, p, (((1,), (1,)), ((), ())), preferred_element_type=jnp.float32)
    m_ref[...] = m_new

    @pl.when(s == pl.num_programs(1) - 1)
    def _():
        ctx = acc_ref[...] / l_ref[...]                                # (C, 1)
        v = _value_mlp(ctx, w1_ref[...], b1_ref[...], g_ref[...], bt_ref[...],
                       w2_ref[...], b2_ref[...])
        v_ref[0] = v.astype(v_ref.dtype)


# ----------------------------------------------------------------------------
# Strip path, pass 2: out = x + value (broadcast over the lane/HW axis).
# ----------------------------------------------------------------------------
def _gcb_add_kernel(x_ref, v_ref, o_ref):
    o_ref[...] = (x_ref[...] + v_ref[...]).astype(o_ref.dtype)


# ----------------------------------------------------------------------------
# Wrapper
# ----------------------------------------------------------------------------
def _round_up(a, b):
    return ((a + b - 1) // b) * b


@functools.partial(jax.jit, static_argnames=("fused_vmem_bytes", "strip_bytes"))
def global_context_block(x_nchw, params, *, fused_vmem_bytes=3 << 20,
                         strip_bytes=2 << 20):
    """x_nchw: (B, C, H, W) -> (B, C, H, W), matching the PyTorch module."""
    wk, bk = params["wk"], params["bk"]
    w1, b1 = params["w1"], params["b1"]
    g, bt = params["ln_gamma"], params["ln_beta"]
    w2, b2 = params["w2"], params["b2"]

    B, C, H, W = x_nchw.shape
    HW = H * W
    Cm = w1.shape[0]

    # Pure metadata reshape (contiguous dims) -> NO HBM transpose pass.
    x = x_nchw.reshape(B, C, HW)
    itemsize = x.dtype.itemsize
    image_bytes = C * HW * itemsize

    # --- fused single-pass path: 1 read + 1 write of x -----------------------
    if image_bytes <= fused_vmem_bytes:
        cmap = lambda b: (0, 0)  # grid-invariant parameter blocks
        out = pl.pallas_call(
            _gcb_fused_kernel,
            out_shape=jax.ShapeDtypeStruct((B, C, HW), x.dtype),
            grid=(B,),
            in_specs=[
                pl.BlockSpec((1, C, HW), lambda b: (b, 0, 0)),
                pl.BlockSpec((1, C), cmap),    # wk
                pl.BlockSpec((1, 1), cmap),    # bk
                pl.BlockSpec((Cm, C), cmap),   # w1
                pl.BlockSpec((Cm, 1), cmap),   # b1
                pl.BlockSpec((Cm, 1), cmap),   # ln gamma
                pl.BlockSpec((Cm, 1), cmap),   # ln beta
                pl.BlockSpec((C, Cm), cmap),   # w2
                pl.BlockSpec((C, 1), cmap),    # b2
            ],
            out_specs=pl.BlockSpec((1, C, HW), lambda b: (b, 0, 0)),
            compiler_params=pltpu.CompilerParams(
                dimension_semantics=("parallel",),
                vmem_limit_bytes=32 << 20),
        )(x, wk, bk, w1, b1, g, bt, w2, b2)
        return out.reshape(B, C, H, W)

    # --- strip path: byte-targeted lane-dense strips, online softmax ---------
    t = max(strip_bytes // (C * itemsize), 128)
    t = max(128, (t // 128) * 128)          # lane-dense multiple of 128
    t = min(t, _round_up(HW, 128))          # never bigger than one image row
    S = pl.cdiv(HW, t)
    needs_mask = (HW % t) != 0

    cmap = lambda b, s: (0, 0)
    ctx_kernel = functools.partial(_gcb_ctx_kernel, hw=HW, strip=t,
                                   needs_mask=needs_mask)

    # pass 1: per-batch value vector (B, C, 1)
    v = pl.pallas_call(
        ctx_kernel,
        out_shape=jax.ShapeDtypeStruct((B, C, 1), x.dtype),
        grid=(B, S),
        in_specs=[
            pl.BlockSpec((1, C, t), lambda b, s: (b, 0, s)),
            pl.BlockSpec((1, C), cmap),
            pl.BlockSpec((1, 1), cmap),
            pl.BlockSpec((Cm, C), cmap),
            pl.BlockSpec((Cm, 1), cmap),
            pl.BlockSpec((Cm, 1), cmap),
            pl.BlockSpec((Cm, 1), cmap),
            pl.BlockSpec((C, Cm), cmap),
            pl.BlockSpec((C, 1), cmap),
        ],
        out_specs=pl.BlockSpec((1, C, 1), lambda b, s: (b, 0, 0)),
        scratch_shapes=[
            pltpu.VMEM((1, 1), jnp.float32),   # running max
            pltpu.VMEM((1, 1), jnp.float32),   # running softmax denom
            pltpu.VMEM((C, 1), jnp.float32),   # running weighted sum of x
        ],
        compiler_params=pltpu.CompilerParams(
            dimension_semantics=("parallel", "arbitrary"),
            vmem_limit_bytes=32 << 20),
    )(x, wk, bk, w1, b1, g, bt, w2, b2)

    # pass 2: out = x + value (broadcast over HW), lane-dense stores
    out = pl.pallas_call(
        _gcb_add_kernel,
        out_shape=jax.ShapeDtypeStruct((B, C, HW), x.dtype),
        grid=(B, S),
        in_specs=[
            pl.BlockSpec((1, C, t), lambda b, s: (b, 0, s)),
            pl.BlockSpec((1, C, 1), lambda b, s: (b, 0, 0)),
        ],
        out_specs=pl.BlockSpec((1, C, t), lambda b, s: (b, 0, s)),
        compiler_params=pltpu.CompilerParams(
            dimension_semantics=("parallel", "parallel"),
            vmem_limit_bytes=32 << 20),
    )(x, v)

    return out.reshape(B, C, H, W)


# ----------------------------------------------------------------------------
# Parameters + pure-JAX reference (for correctness check)
# ----------------------------------------------------------------------------
def init_params(key, in_channels, scale=16):
    c = in_channels
    cm = max(in_channels // scale, 1)
    ks = jax.random.split(key, 8)
    rn = lambda k, shape, fan: (jax.random.normal(k, shape, jnp.float32)
                                / jnp.sqrt(float(fan)))
    return {
        "wk": rn(ks[0], (1, c), c),                     # Conv_key weight (1,C)
        "bk": 0.1 * rn(ks[1], (1, 1), 1),               # Conv_key bias
        "w1": rn(ks[2], (cm, c), c),                    # Conv_value[0] weight
        "b1": 0.1 * rn(ks[3], (cm, 1), 1),              # Conv_value[0] bias
        "ln_gamma": 1.0 + 0.1 * rn(ks[4], (cm, 1), 1),  # LayerNorm weight
        "ln_beta": 0.1 * rn(ks[5], (cm, 1), 1),         # LayerNorm bias
        "w2": rn(ks[6], (c, cm), cm),                   # Conv_value[3] weight
        "b2": 0.1 * rn(ks[7], (c, 1), 1),               # Conv_value[3] bias
    }


def gcb_reference(x_nchw, params):
    wk, bk = params["wk"], params["bk"]
    w1, b1 = params["w1"], params["b1"]
    g, bt = params["ln_gamma"], params["ln_beta"]
    w2, b2 = params["w2"], params["b2"]
    B, C, H, W = x_nchw.shape
    x = x_nchw.reshape(B, C, H * W)
    logits = jnp.einsum("bcs,c->bs", x, wk[0]) + bk[0, 0]
    key = jax.nn.softmax(logits, axis=-1)
    ctx = jnp.einsum("bcs,bs->bc", x, key)                         # (B, C)
    z = ctx @ w1.T + b1[:, 0]                                      # (B, Cm)
    mu = jnp.mean(z, axis=-1, keepdims=True)
    var = jnp.mean((z - mu) ** 2, axis=-1, keepdims=True)
    z = (z - mu) / jnp.sqrt(var + _LN_EPS) * g[:, 0] + bt[:, 0]
    z = jnp.maximum(z, 0.0)
    v = z @ w2.T + b2[:, 0]                                        # (B, C)
    out = x + v[:, :, None]
    return out.reshape(B, C, H, W)


# ----------------------------------------------------------------------------
if __name__ == "__main__":
    key = jax.random.PRNGKey(0)
    B, C = 2, 64                         # in_channels=64, scale=16 -> Cm=4

    # 1) fused single-pass path (whole image resident in VMEM)
    x = jax.random.normal(jax.random.fold_in(key, 1), (B, C, 16, 16),
                          jnp.float32)
    params = init_params(jax.random.fold_in(key, 2), C, scale=16)
    out = jax.block_until_ready(global_context_block(x, params))
    assert out.shape == x.shape, out.shape
    np.testing.assert_allclose(np.asarray(out), np.asarray(gcb_reference(x, params)),
                               rtol=1e-4, atol=1e-4)

    # 2) strip path with masked tail (HW=225 -> two 128-lane strips), forced by
    #    shrinking the fused budget; exercises the online-softmax accumulation.
    x2 = jax.random.normal(jax.random.fold_in(key, 3), (B, C, 15, 15),
                           jnp.float32)
    out2 = jax.block_until_ready(
        global_context_block(x2, params, fused_vmem_bytes=0,
                             strip_bytes=32 << 10))
    assert out2.shape == x2.shape, out2.shape
    np.testing.assert_allclose(np.asarray(out2),
                               np.asarray(gcb_reference(x2, params)),
                               rtol=1e-4, atol=1e-4)

    print("KERNEL_OK")
</pallas_src>

<mosaic_0001>
module attributes {stable_mosaic.version = 11 : i64} {
  func.func @_gcb_fused_kernel(%arg0: i32, %arg1: memref<1x64x256xf32, #tpu.memory_space<vmem>>, %arg2: memref<1x64xf32, #tpu.memory_space<vmem>>, %arg3: memref<1x1xf32, #tpu.memory_space<vmem>>, %arg4: memref<4x64xf32, #tpu.memory_space<vmem>>, %arg5: memref<4x1xf32, #tpu.memory_space<vmem>>, %arg6: memref<4x1xf32, #tpu.memory_space<vmem>>, %arg7: memref<4x1xf32, #tpu.memory_space<vmem>>, %arg8: memref<64x4xf32, #tpu.memory_space<vmem>>, %arg9: memref<64x1xf32, #tpu.memory_space<vmem>>, %arg10: memref<1x64x256xf32, #tpu.memory_space<vmem>>) attributes {dimension_semantics = [#tpu.dimension_semantics<parallel>], iteration_bounds = array<i64: 2>, scalar_prefetch = 0 : i64, scratch_operands = 0 : i64, tpu.core_type = #tpu.core_type<tc>, window_params = [{transform_indices = @transform_0, window_bounds = array<i64: 1, 64, 256>}, {pipeline_mode = #tpu.pipeline_mode<synchronous>, transform_indices = @transform_1, window_bounds = array<i64: 1, 64>}, {pipeline_mode = #tpu.pipeline_mode<synchronous>, transform_indices = @transform_2, window_bounds = array<i64: 1, 1>}, {pipeline_mode = #tpu.pipeline_mode<synchronous>, transform_indices = @transform_3, window_bounds = array<i64: 4, 64>}, {pipeline_mode = #tpu.pipeline_mode<synchronous>, transform_indices = @transform_4, window_bounds = array<i64: 4, 1>}, {pipeline_mode = #tpu.pipeline_mode<synchronous>, transform_indices = @transform_5, window_bounds = array<i64: 4, 1>}, {pipeline_mode = #tpu.pipeline_mode<synchronous>, transform_indices = @transform_6, window_bounds = array<i64: 4, 1>}, {pipeline_mode = #tpu.pipeline_mode<synchronous>, transform_indices = @transform_7, window_bounds = array<i64: 64, 4>}, {pipeline_mode = #tpu.pipeline_mode<synchronous>, transform_indices = @transform_8, window_bounds = array<i64: 64, 1>}, {transform_indices = @transform_9, window_bounds = array<i64: 1, 64, 256>}]} {
    %c0 = arith.constant 0 : index
    %c0_0 = arith.constant 0 : index
    %c0_1 = arith.constant 0 : index
    %0 = vector.load %arg1[%c0, %c0_0, %c0_1] : memref<1x64x256xf32, #tpu.memory_space<vmem>>, vector<1x64x256xf32>
    %1 = vector.shape_cast %0 : vector<1x64x256xf32> to vector<64x256xf32>
    %c0_2 = arith.constant 0 : index
    %c0_3 = arith.constant 0 : index
    %2 = vector.load %arg2[%c0_2, %c0_3] : memref<1x64xf32, #tpu.memory_space<vmem>>, vector<1x64xf32>
    %cst = arith.constant dense<0.000000e+00> : vector<1x256xf32>
    %3 = tpu.matmul %2, %1, %cst {dimension_numbers = #tpu.dot_dimension_numbers<[1], [0], [0], [1], [0, 0, 1, 1], [], []>} : vector<1x64xf32>, vector<64x256xf32>, vector<1x256xf32> -> vector<1x256xf32>
    %c0_4 = arith.constant 0 : index
    %c0_5 = arith.constant 0 : index
    %4 = vector.load %arg3[%c0_4, %c0_5] : memref<1x1xf32, #tpu.memory_space<vmem>>, vector<1x1xf32>
    %5 = vector.broadcast %4 : vector<1x1xf32> to vector<1x256xf32>
    %6 = arith.addf %3, %5 : vector<1x256xf32>
    %cst_6 = arith.constant dense<0xFF800000> : vector<1xf32>
    %7 = vector.multi_reduction <maximumf>, %6, %cst_6 [1] : vector<1x256xf32> to vector<1xf32>
    %8 = vector.shape_cast %7 : vector<1xf32> to vector<1x1xf32>
    %9 = vector.broadcast %8 : vector<1x1xf32> to vector<1x256xf32>
    %10 = arith.subf %6, %9 : vector<1x256xf32>
    %11 = math.exp %10 : vector<1x256xf32>
    %cst_7 = arith.constant dense<0.000000e+00> : vector<1xf32>
    %12 = vector.multi_reduction <add>, %11, %cst_7 [1] : vector<1x256xf32> to vector<1xf32>
    %13 = vector.shape_cast %12 : vector<1xf32> to vector<1x1xf32>
    %cst_8 = arith.constant dense<0.000000e+00> : vector<64x1xf32>
    %14 = tpu.matmul %1, %11, %cst_8 {dimension_numbers = #tpu.dot_dimension_numbers<[1], [1], [0], [0], [0, 0, 1, 0], [], []>} : vector<64x256xf32>, vector<1x256xf32>, vector<64x1xf32> -> vector<64x1xf32>
    %15 = vector.broadcast %13 : vector<1x1xf32> to vector<64x1xf32>
    %16 = arith.divf %14, %15 : vector<64x1xf32>
    %c0_9 = arith.constant 0 : index
    %c0_10 = arith.constant 0 : index
    %17 = vector.load %arg4[%c0_9, %c0_10] : memref<4x64xf32, #tpu.memory_space<vmem>>, vector<4x64xf32>
    %c0_11 = arith.constant 0 : index
    %c0_12 = arith.constant 0 : index
    %18 = vector.load %arg5[%c0_11, %c0_12] : memref<4x1xf32, #tpu.memory_space<vmem>>, vector<4x1xf32>
    %c0_13 = arith.constant 0 : index
    %c0_14 = arith.constant 0 : index
    %19 = vector.load %arg6[%c0_13, %c0_14] : memref<4x1xf32, #tpu.memory_space<vmem>>, vector<4x1xf32>
    %c0_15 = arith.constant 0 : index
    %c0_16 = arith.constant 0 : index
    %20 = vector.load %arg7[%c0_15, %c0_16] : memref<4x1xf32, #tpu.memory_space<vmem>>, vector<4x1xf32>
    %c0_17 = arith.constant 0 : index
    %c0_18 = arith.constant 0 : index
    %21 = vector.load %arg8[%c0_17, %c0_18] : memref<64x4xf32, #tpu.memory_space<vmem>>, vector<64x4xf32>
    %c0_19 = arith.constant 0 : index
    %c0_20 = arith.constant 0 : index
    %22 = vector.load %arg9[%c0_19, %c0_20] : memref<64x1xf32, #tpu.memory_space<vmem>>, vector<64x1xf32>
    %cst_21 = arith.constant dense<0.000000e+00> : vector<4x1xf32>
    %23 = tpu.matmul %17, %16, %cst_21 {dimension_numbers = #tpu.dot_dimension_numbers<[1], [0], [0], [1], [0, 0, 1, 1], [], []>} : vector<4x64xf32>, vector<64x1xf32>, vector<4x1xf32> -> vector<4x1xf32>
    %24 = arith.addf %23, %18 : vector<4x1xf32>
    %cst_22 = arith.constant dense<0.000000e+00> : vector<1xf32>
    %25 = vector.multi_reduction <add>, %24, %cst_22 [0] : vector<4x1xf32> to vector<1xf32>
    %26 = vector.shape_cast %25 : vector<1xf32> to vector<1x1xf32>
    %cst_23 = arith.constant 4.000000e+00 : f32
    %27 = vector.broadcast %cst_23 : f32 to vector<1x1xf32>
    %28 = arith.divf %26, %27 : vector<1x1xf32>
    %29 = vector.broadcast %28 : vector<1x1xf32> to vector<4x1xf32>
    %30 = arith.subf %24, %29 : vector<4x1xf32>
    %31 = arith.mulf %30, %30 : vector<4x1xf32>
    %cst_24 = arith.constant dense<0.000000e+00> : vector<1xf32>
    %32 = vector.multi_reduction <add>, %31, %cst_24 [0] : vector<4x1xf32> to vector<1xf32>
    %33 = vector.shape_cast %32 : vector<1xf32> to vector<1x1xf32>
    %cst_25 = arith.constant 4.000000e+00 : f32
    %34 = vector.broadcast %cst_25 : f32 to vector<1x1xf32>
    %35 = arith.divf %33, %34 : vector<1x1xf32>
    %36 = vector.broadcast %28 : vector<1x1xf32> to vector<4x1xf32>
    %37 = arith.subf %24, %36 : vector<4x1xf32>
    %cst_26 = arith.constant 9.99999974E-6 : f32
    %38 = vector.broadcast %cst_26 : f32 to vector<1x1xf32>
    %39 = arith.addf %35, %38 : vector<1x1xf32>
    %40 = math.rsqrt %39 : vector<1x1xf32>
    %41 = vector.broadcast %40 : vector<1x1xf32> to vector<4x1xf32>
    %42 = arith.mulf %37, %41 : vector<4x1xf32>
    %43 = arith.mulf %42, %19 : vector<4x1xf32>
    %44 = arith.addf %43, %20 : vector<4x1xf32>
    %cst_27 = arith.constant 0.000000e+00 : f32
    %45 = vector.broadcast %cst_27 : f32 to vector<4x1xf32>
    %46 = arith.maximumf %44, %45 : vector<4x1xf32>
    %cst_28 = arith.constant dense<0.000000e+00> : vector<64x1xf32>
    %47 = tpu.matmul %21, %46, %cst_28 {dimension_numbers = #tpu.dot_dimension_numbers<[1], [0], [0], [1], [0, 0, 1, 1], [], []>} : vector<64x4xf32>, vector<4x1xf32>, vector<64x1xf32> -> vector<64x1xf32>
    %48 = arith.addf %47, %22 : vector<64x1xf32>
    %49 = vector.broadcast %48 : vector<64x1xf32> to vector<64x256xf32>
    %50 = arith.addf %1, %49 : vector<64x256xf32>
    %c0_29 = arith.constant 0 : index
    %c0_30 = arith.constant 0 : index
    %c0_31 = arith.constant 0 : index
    %51 = vector.load %arg10[%c0_29, %c0_30, %c0_31] : memref<1x64x256xf32, #tpu.memory_space<vmem>>, vector<1x64x256xf32>
    %52 = vector.shape_cast %51 : vector<1x64x256xf32> to vector<64x256xf32>
    %53 = vector.shape_cast %50 : vector<64x256xf32> to vector<1x64x256xf32>
    tpu.vector_store %arg10[%c0_29, %c0_30, %c0_31], %53 {strides = array<i32>} : memref<1x64x256xf32, #tpu.memory_space<vmem>>, vector<1x64x256xf32>,
    return
  }
  func.func @transform_0(%arg0: i32) -> (i32, i32, i32) {
    %c0_i32 = arith.constant 0 : i32
    %c0_i32_0 = arith.constant 0 : i32
    %c0_i32_1 = arith.constant 0 : i32
    return %arg0, %c0_i32, %c0_i32_0 : i32, i32, i32
  }
  func.func @transform_1(%arg0: i32) -> (i32, i32) {
    %c0_i32 = arith.constant 0 : i32
    %c0_i32_0 = arith.constant 0 : i32
    %c0_i32_1 = arith.constant 0 : i32
    return %c0_i32, %c0_i32_0 : i32, i32
  }
  func.func @transform_2(%arg0: i32) -> (i32, i32) {
    %c0_i32 = arith.constant 0 : i32
    %c0_i32_0 = arith.constant 0 : i32
    %c0_i32_1 = arith.constant 0 : i32
    return %c0_i32, %c0_i32_0 : i32, i32
  }
  func.func @transform_3(%arg0: i32) -> (i32, i32) {
    %c0_i32 = arith.constant 0 : i32
    %c0_i32_0 = arith.constant 0 : i32
    %c0_i32_1 = arith.constant 0 : i32
    return %c0_i32, %c0_i32_0 : i32, i32
  }
  func.func @transform_4(%arg0: i32) -> (i32, i32) {
    %c0_i32 = arith.constant 0 : i32
    %c0_i32_0 = arith.constant 0 : i32
    %c0_i32_1 = arith.constant 0 : i32
    return %c0_i32, %c0_i32_0 : i32, i32
  }
  func.func @transform_5(%arg0: i32) -> (i32, i32) {
    %c0_i32 = arith.constant 0 : i32
    %c0_i32_0 = arith.constant 0 : i32
    %c0_i32_1 = arith.constant 0 : i32
    return %c0_i32, %c0_i32_0 : i32, i32
  }
  func.func @transform_6(%arg0: i32) -> (i32, i32) {
    %c0_i32 = arith.constant 0 : i32
    %c0_i32_0 = arith.constant 0 : i32
    %c0_i32_1 = arith.constant 0 : i32
    return %c0_i32, %c0_i32_0 : i32, i32
  }
  func.func @transform_7(%arg0: i32) -> (i32, i32) {
    %c0_i32 = arith.constant 0 : i32
    %c0_i32_0 = arith.constant 0 : i32
    %c0_i32_1 = arith.constant 0 : i32
    return %c0_i32, %c0_i32_0 : i32, i32
  }
  func.func @transform_8(%arg0: i32) -> (i32, i32) {
    %c0_i32 = arith.constant 0 : i32
    %c0_i32_0 = arith.constant 0 : i32
    %c0_i32_1 = arith.constant 0 : i32
    return %c0_i32, %c0_i32_0 : i32, i32
  }
  func.func @transform_9(%arg0: i32) -> (i32, i32, i32) {
    %c0_i32 = arith.constant 0 : i32
    %c0_i32_0 = arith.constant 0 : i32
    %c0_i32_1 = arith.constant 0 : i32
    return %arg0, %c0_i32, %c0_i32_0 : i32, i32, i32
  }
}

</mosaic_0001>

<llo_original>
// kernel: global_context_block.1
$region0: #{global_context_block.1}
  #allocation0 [shape = 'u32[]', space=smem, size = 0x4, offset = 0x4, fixed_abs, tag = 'smem constant byte address 0x4 - core index']
  #allocation1 [shape = 'u32[144,128]{1,0:T(1,128)}', space=vmem, size = 0x12000, scoped, tag = 'internal scratch']
  #allocation2 [shape = 'f32[1,1]{1,0:T(1,128)S(1)}', space=vmem, size = 0x200, scoped, tag = 'scoped memory for global_context_block.1']
  %s0 = inlined_call_operand.vmem [shape: f32[2,64,256], index: 0, kind: input, shape index: {}]
  %s1 = inlined_call_operand.vmem [shape: f32[1,64], index: 1, kind: input, shape index: {}]
  %s2 = inlined_call_operand.<no memory space> [shape: f32[1,1], index: 2, kind: input, shape index: {}]
  %s3 = inlined_call_operand.vmem [shape: f32[4,64], index: 3, kind: input, shape index: {}]
  %s4 = inlined_call_operand.vmem [shape: f32[4,1], index: 4, kind: input, shape index: {}]
  %s5 = inlined_call_operand.vmem [shape: f32[4,1], index: 5, kind: input, shape index: {}]
  %s6 = inlined_call_operand.vmem [shape: f32[4,1], index: 6, kind: input, shape index: {}]
  %s7 = inlined_call_operand.vmem [shape: f32[64,4], index: 7, kind: input, shape index: {}]
  %s8 = inlined_call_operand.vmem [shape: f32[64,1], index: 8, kind: input, shape index: {}]
  %s9 = inlined_call_operand.vmem [shape: f32[2,64,256], index: 9, kind: output, shape index: {}]
  %s10 = sld [smem:[#allocation0]]
  $region69: #{global_context_block.1} parent=0
    _
  %s12 = ssub.s32 1, %s10
  %s13 = scalar_select 0, %s12, %s10
  %v14 = vstv %s2
  %15 = vst [vmem:[#allocation2] sm:$0x1] %v14
  loop: start=0, step=1, limit=4
  $region2: #{global_context_block.1} parent=0 // loop_pre_header
    _
  $region3: #{global_context_block.1} parent=0 // loop_header
    %s17 = sphi 0, %s21
    %p18 = scmp.ge.s32.totalorder %s17, 4
    %s27 = sphi 0, %s29
    %s30 = sphi 0, %s27
    %s31 = sphi 0, %s30
    %s47 = sphi 0, %s31
    %s51 = sphi 0, %s51
    %s53 = sphi 0, %s51
    %s54 = sphi 0, %s53
    %s68 = sphi 0, %s54
    %s72 = sphi 0, %s72
    %s74 = sphi 0, %s72
    %s75 = sphi 0, %s74
    %s89 = sphi 0, %s75
    %s93 = sphi 0, %s93
    %s95 = sphi 0, %s93
    %s96 = sphi 0, %s95
    %s110 = sphi 0, %s96
    %s114 = sphi 0, %s114
    %s116 = sphi 0, %s114
    %s117 = sphi 0, %s116
    %s131 = sphi 0, %s117
    %s135 = sphi 0, %s135
    %s137 = sphi 0, %s135
    %s138 = sphi 0, %s137
    %s152 = sphi 0, %s138
    %s156 = sphi 0, %s156
    %s158 = sphi 0, %s156
    %s159 = sphi 0, %s158
    %s173 = sphi 0, %s159
    %s177 = sphi 0, %s177
    %s179 = sphi 0, %s177
    %s180 = sphi 0, %s179
    %s194 = sphi 0, %s180
    %s198 = sphi 0, %s198
    %s200 = sphi 0, %s198
    %s201 = sphi 0, %s200
    %s215 = sphi 0, %s201
    %s221 = sphi 0, %s223
    %s224 = sphi 0, %s221
    %s225 = sphi 0, %s224
    %s241 = sphi 0, %s225
  $region4: #{global_context_block.1} parent=0 // loop_header_branch
    %20 = sbr.rel (%p18) target = $region8
  $region5: #{global_context_block.1} parent=0 // loop_body
    %s22 = ssub.s32 %s17, 1
    %s23 = ssub.s32 %s17, 2
    %s24 = sadd.s32 %s17, 1
    %s25 = ssub.s32 %s17, %s24
    %p26 = scmp.eq.s32.totalorder %s25, 0
    %s28 = sadd.s32 %s27, 1
    %s29 = scalar_select %p26, %s27, %s28
    %p32 = pneg %p26
    %p33 = scmp.eq.s32.totalorder %s17, 1
    %p34 = por %p32, %p33
    %p35 = scmp.ne.s32.totalorder %s27, %s30
    %p36 = scmp.eq.s32.totalorder %s17, 0
    %p37 = por %p35, %p36
    %p38 = scmp.ne.s32.totalorder %s27, %s30
    %p39 = scmp.eq.s32.totalorder %s22, 1
    %p40 = por %p38, %p39
    %p41 = scmp.ne.s32.totalorder %s30, %s31
    %p42 = scmp.eq.s32.totalorder %s22, 0
    %p43 = por %p41, %p42
    %p44 = scmp.ne.s32.totalorder %s30, %s31
    %p45 = scmp.eq.s32.totalorder %s23, 1
    %p46 = por %p44, %p45
    %p48 = scmp.ne.s32.totalorder %s31, %s47
    %p49 = scmp.eq.s32.totalorder %s23, 0
    %p50 = por %p48, %p49
    %s52 = sadd.s32 %s51, 1
    %p55 = scmp.eq.s32.totalorder %s17, 1
    %p56 = scmp.ne.s32.totalorder %s51, %s53
    %p57 = scmp.eq.s32.totalorder %s17, 0
    %p58 = por %p56, %p57
    %p59 = scmp.ne.s32.totalorder %s51, %s53
    %p60 = scmp.eq.s32.totalorder %s22, 1
    %p61 = por %p59, %p60
    %p62 = scmp.ne.s32.totalorder %s53, %s54
    %p63 = scmp.eq.s32.totalorder %s22, 0
    %p64 = por %p62, %p63
    %p65 = scmp.ne.s32.totalorder %s53, %s54
    %p66 = scmp.eq.s32.totalorder %s23, 1
    %p67 = por %p65, %p66
    %p69 = scmp.ne.s32.totalorder %s54, %s68
    %p70 = scmp.eq.s32.totalorder %s23, 0
    %p71 = por %p69, %p70
    %s73 = sadd.s32 %s72, 1
    %p76 = scmp.eq.s32.totalorder %s17, 1
    %p77 = scmp.ne.s32.totalorder %s72, %s74
    %p78 = scmp.eq.s32.totalorder %s17, 0
    %p79 = por %p77, %p78
    %p80 = scmp.ne.s32.totalorder %s72, %s74
    %p81 = scmp.eq.s32.totalorder %s22, 1
    %p82 = por %p80, %p81
    %p83 = scmp.ne.s32.totalorder %s74, %s75
    %p84 = scmp.eq.s32.totalorder %s22, 0
    %p85 = por %p83, %p84
    %p86 = scmp.ne.s32.totalorder %s74, %s75
    %p87 = scmp.eq.s32.totalorder %s23, 1
    %p88 = por %p86, %p87
    %p90 = scmp.ne.s32.totalorder %s75, %s89
    %p91 = scmp.eq.s32.totalorder %s23, 0
    %p92 = por %p90, %p91
    %s94 = sadd.s32 %s93, 1
    %p97 = scmp.eq.s32.totalorder %s17, 1
    %p98 = scmp.ne.s32.totalorder %s93, %s95
    %p99 = scmp.eq.s32.totalorder %s17, 0
    %p100 = por %p98, %p99
    %p101 = scmp.ne.s32.totalorder %s93, %s95
    %p102 = scmp.eq.s32.totalorder %s22, 1
    %p103 = por %p101, %p102
    %p104 = scmp.ne.s32.totalorder %s95, %s96
    %p105 = scmp.eq.s32.totalorder %s22, 0
    %p106 = por %p104, %p105
    %p107 = scmp.ne.s32.totalorder %s95, %s96
    %p108 = scmp.eq.s32.totalorder %s23, 1
    %p109 = por %p107, %p108
    %p111 = scmp.ne.s32.totalorder %s96, %s110
    %p112 = scmp.eq.s32.totalorder %s23, 0
    %p113 = por %p111, %p112
    %s115 = sadd.s32 %s114, 1
    %p118 = scmp.eq.s32.totalorder %s17, 1
    %p119 = scmp.ne.s32.totalorder %s114, %s116
    %p120 = scmp.eq.s32.totalorder %s17, 0
    %p121 = por %p119, %p120
    %p122 = scmp.ne.s32.totalorder %s114, %s116
    %p123 = scmp.eq.s32.totalorder %s22, 1
    %p124 = por %p122, %p123
    %p125 = scmp.ne.s32.totalorder %s116, %s117
    %p126 = scmp.eq.s32.totalorder %s22, 0
    %p127 = por %p125, %p126
    %p128 = scmp.ne.s32.totalorder %s116, %s117
    %p129 = scmp.eq.s32.totalorder %s23, 1
    %p130 = por %p128, %p129
    %p132 = scmp.ne.s32.totalorder %s117, %s131
    %p133 = scmp.eq.s32.totalorder %s23, 0
    %p134 = por %p132, %p133
    %s136 = sadd.s32 %s135, 1
    %p139 = scmp.eq.s32.totalorder %s17, 1
    %p140 = scmp.ne.s32.totalorder %s135, %s137
    %p141 = scmp.eq.s32.totalorder %s17, 0
    %p142 = por %p140, %p141
    %p143 = scmp.ne.s32.totalorder %s135, %s137
    %p144 = scmp.eq.s32.totalorder %s22, 1
    %p145 = por %p143, %p144
    %p146 = scmp.ne.s32.totalorder %s137, %s138
    %p147 = scmp.eq.s32.totalorder %s22, 0
    %p148 = por %p146, %p147
    %p149 = scmp.ne.s32.totalorder %s137, %s138
    %p150 = scmp.eq.s32.totalorder %s23, 1
    %p151 = por %p149, %p150
    %p153 = scmp.ne.s32.totalorder %s138, %s152
    %p154 = scmp.eq.s32.totalorder %s23, 0
    %p155 = por %p153, %p154
    %s157 = sadd.s32 %s156, 1
    %p160 = scmp.eq.s32.totalorder %s17, 1
    %p161 = scmp.ne.s32.totalorder %s156, %s158
    %p162 = scmp.eq.s32.totalorder %s17, 0
    %p163 = por %p161, %p162
    %p164 = scmp.ne.s32.totalorder %s156, %s158
    %p165 = scmp.eq.s32.totalorder %s22, 1
    %p166 = por %p164, %p165
    %p167 = scmp.ne.s32.totalorder %s158, %s159
    %p168 = scmp.eq.s32.totalorder %s22, 0
    %p169 = por %p167, %p168
    %p170 = scmp.ne.s32.totalorder %s158, %s159
    %p171 = scmp.eq.s32.totalorder %s23, 1
    %p172 = por %p170, %p171
    %p174 = scmp.ne.s32.totalorder %s159, %s173
    %p175 = scmp.eq.s32.totalorder %s23, 0
    %p176 = por %p174, %p175
    %s178 = sadd.s32 %s177, 1
    %p181 = scmp.eq.s32.totalorder %s17, 1
    %p182 = scmp.ne.s32.totalorder %s177, %s179
    %p183 = scmp.eq.s32.totalorder %s17, 0
    %p184 = por %p182, %p183
    %p185 = scmp.ne.s32.totalorder %s177, %s179
    %p186 = scmp.eq.s32.totalorder %s22, 1
    %p187 = por %p185, %p186
    %p188 = scmp.ne.s32.totalorder %s179, %s180
    %p189 = scmp.eq.s32.totalorder %s22, 0
    %p190 = por %p188, %p189
    %p191 = scmp.ne.s32.totalorder %s179, %s180
    %p192 = scmp.eq.s32.totalorder %s23, 1
    %p193 = por %p191, %p192
    %p195 = scmp.ne.s32.totalorder %s180, %s194
    %p196 = scmp.eq.s32.totalorder %s23, 0
    %p197 = por %p195, %p196
    %s199 = sadd.s32 %s198, 1
    %p202 = scmp.eq.s32.totalorder %s17, 1
    %p203 = scmp.ne.s32.totalorder %s198, %s200
    %p204 = scmp.eq.s32.totalorder %s17, 0
    %p205 = por %p203, %p204
    %p206 = scmp.ne.s32.totalorder %s198, %s200
    %p207 = scmp.eq.s32.totalorder %s22, 1
    %p208 = por %p206, %p207
    %p209 = scmp.ne.s32.totalorder %s200, %s201
    %p210 = scmp.eq.s32.totalorder %s22, 0
    %p211 = por %p209, %p210
    %p212 = scmp.ne.s32.totalorder %s200, %s201
    %p213 = scmp.eq.s32.totalorder %s23, 1
    %p214 = por %p212, %p213
    %p216 = scmp.ne.s32.totalorder %s201, %s215
    %p217 = scmp.eq.s32.totalorder %s23, 0
    %p218 = por %p216, %p217
    %s219 = ssub.s32 %s17, %s24
    %p220 = scmp.eq.s32.totalorder %s219, 0
    %s222 = sadd.s32 %s221, 1
    %s223 = scalar_select %p220, %s221, %s222
    %p226 = pneg %p220
    %p227 = scmp.eq.s32.totalorder %s17, 1
    %p228 = por %p226, %p227
    %p229 = scmp.ne.s32.totalorder %s221, %s224
    %p230 = scmp.eq.s32.totalorder %s17, 0
    %p231 = por %p229, %p230
    %p232 = scmp.ne.s32.totalorder %s221, %s224
    %p233 = scmp.eq.s32.totalorder %s22, 1
    %p234 = por %p232, %p233
    %p235 = scmp.ne.s32.totalorder %s224, %s225
    %p236 = scmp.eq.s32.totalorder %s22, 0
    %p237 = por %p235, %p236
    %p238 = scmp.ne.s32.totalorder %s224, %s225
    %p239 = scmp.eq.s32.totalorder %s23, 1
    %p240 = por %p238, %p239
    %p242 = scmp.ne.s32.totalorder %s225, %s241
    %p243 = scmp.eq.s32.totalorder %s23, 0
    %p244 = por %p242, %p243
    %p245 = scmp.le.s32.totalorder 1, %s17
    %p246 = scmp.lt.s32.totalorder %s17, 3
    %p247 = pnand %p245, %p246
    %p248 = pneg %p247
    // Predicated region
    $region9: #{global_context_block.1} parent=5 // pred_check
      _
    $region10: #{global_context_block.1} parent=5 // pred_check_branch
      %250 = sbr.rel (%p247) target = $region12
    $region11: #{global_context_block.1} parent=5 // pred_region
      %s251 = ssub.s32 %s17, 1
      // Predicated region
      $region13: #{global_context_block.1} parent=11 // pred_check
        %p252 = pneg %p64
      $region14: #{global_context_block.1} parent=11 // pred_check_branch
        %254 = sbr.rel (%p252) target = $region16
      $region15: #{global_context_block.1} parent=11 // pred_region
        _
      $region16: #{global_context_block.1} parent=11 // pred_fallthru
        _
      // Predicated region
      $region17: #{global_context_block.1} parent=11 // pred_check
        %p255 = pneg %p85
      $region18: #{global_context_block.1} parent=11 // pred_check_branch
        %257 = sbr.rel (%p255) target = $region20
      $region19: #{global_context_block.1} parent=11 // pred_region
        _
      $region20: #{global_context_block.1} parent=11 // pred_fallthru
        _
      // Predicated region
      $region21: #{global_context_block.1} parent=11 // pred_check
        %p258 = pneg %p106
      $region22: #{global_context_block.1} parent=11 // pred_check_branch
        %260 = sbr.rel (%p258) target = $region24
      $region23: #{global_context_block.1} parent=11 // pred_region
        _
      $region24: #{global_context_block.1} parent=11 // pred_fallthru
        _
      // Predicated region
      $region25: #{global_context_block.1} parent=11 // pred_check
        %p261 = pneg %p127
      $region26: #{global_context_block.1} parent=11 // pred_check_branch
        %263 = sbr.rel (%p261) target = $region28
      $region27: #{global_context_block.1} parent=11 // pred_region
        _
      $region28: #{global_context_block.1} parent=11 // pred_fallthru
        _
      // Predicated region
      $region29: #{global_context_block.1} parent=11 // pred_check
        %p264 = pneg %p148
      $region30: #{global_context_block.1} parent=11 // pred_check_branch
        %266 = sbr.rel (%p264) target = $region32
      $region31: #{global_context_block.1} parent=11 // pred_region
        _
      $region32: #{global_context_block.1} parent=11 // pred_fallthru
        _
      // Predicated region
      $region33: #{global_context_block.1} parent=11 // pred_check
        %p267 = pneg %p169
      $region34: #{global_context_block.1} parent=11 // pred_check_branch
        %269 = sbr.rel (%p267) target = $region36
      $region35: #{global_context_block.1} parent=11 // pred_region
        _
      $region36: #{global_context_block.1} parent=11 // pred_fallthru
        _
      // Predicated region
      $region37: #{global_context_block.1} parent=11 // pred_check
        %p270 = pneg %p190
      $region38: #{global_context_block.1} parent=11 // pred_check_branch
        %272 = sbr.rel (%p270) target = $region40
      $region39: #{global_context_block.1} parent=11 // pred_region
        _
      $region40: #{global_context_block.1} parent=11 // pred_fallthru
        _
      // Predicated region
      $region41: #{global_context_block.1} parent=11 // pred_check
        %p273 = pneg %p211
      $region42: #{global_context_block.1} parent=11 // pred_check_branch
        %275 = sbr.rel (%p273) target = $region44
      $region43: #{global_context_block.1} parent=11 // pred_region
        _
      $region44: #{global_context_block.1} parent=11 // pred_fallthru
        _
    $region12: #{global_context_block.1} parent=5 // pred_fallthru
      _
    %p276 = scmp.lt.s32.totalorder %s17, 2
    // Predicated region
    $region45: #{global_context_block.1} parent=5 // pred_check
      %p277 = pneg %p276
    $region46: #{global_context_block.1} parent=5 // pred_check_branch
      %279 = sbr.rel (%p277) target = $region48
    $region47: #{global_context_block.1} parent=5 // pred_region
      // Predicated region
      $region49: #{global_context_block.1} parent=47 // pred_check
        %p280 = pneg %p37
      $region50: #{global_context_block.1} parent=47 // pred_check_branch
        %282 = sbr.rel (%p280) target = $region52
      $region51: #{global_context_block.1} parent=47 // pred_region
        %p283 = scmp.lt.s32.totalorder %s17, 1
        %s284 = scalar_select %p283, %s17, 1
        %s285 = smul.addr %s284, 16
        %s286 = smul.addr %s285, 8
        %s287 = scalar_lea.vmem %s0, %s286
      $region52: #{global_context_block.1} parent=47 // pred_fallthru
        _
    $region48: #{global_context_block.1} parent=5 // pred_fallthru
      _
    %p288 = scmp.le.s32.totalorder 1, %s17
    %p289 = scmp.lt.s32.totalorder %s17, 3
    %p290 = pnand %p288, %p289
    %p291 = pneg %p290
    // Predicated region
    $region53: #{global_context_block.1} parent=5 // pred_check
      _
    $region54: #{global_context_block.1} parent=5 // pred_check_branch
      %293 = sbr.rel (%p290) target = $region56
    $region55: #{global_context_block.1} parent=5 // pred_region
      %s294 = ssub.s32 %s17, 1
      %p295 = scmp.lt.s32.totalorder %s22, 1
      %s296 = scalar_select %p295, %s22, 1
      %s297 = smul.addr %s296, 16
      %s298 = smul.addr %s297, 8
      %s299 = scalar_lea.vmem %s0, %s298
      %p300 = pneg %p43
      %p301 = pneg %p40
      %p302 = pneg %p64
      %p303 = pneg %p61
      %p304 = pneg %p85
      %p305 = pneg %p82
      %p306 = pneg %p106
      %p307 = pneg %p103
      %p308 = pneg %p127
      %p309 = pneg %p124
      %p310 = pneg %p148
      %p311 = pneg %p145
      %p312 = pneg %p169
      %p313 = pneg %p166
      %p314 = pneg %p190
      %p315 = pneg %p187
      %p316 = pneg %p211
      %p317 = pneg %p208
      %p318 = pneg %p237
      %p319 = pneg %p234
      %p320 = scmp.lt.s32.totalorder %s22, 1
      %s321 = scalar_select %p320, %s22, 1
      %s322 = smul.addr %s321, 16
      %s323 = smul.addr %s322, 8
      %s324 = scalar_lea.vmem %s9, %s323
      %p325 = scmp.lt.s32.totalorder %s22, 1
      %s326 = scalar_select %p325, %s22, 1
      %s327 = smul.addr %s326, 16
      %s328 = smul.addr %s327, 8
      %s329 = scalar_lea.vmem %s0, %s328
      %p330 = scmp.lt.s32.totalorder %s22, 1
      %s331 = scalar_select %p330, %s22, 1
      %s332 = smul.addr %s331, 16
      %s333 = smul.addr %s332, 8
      %s334 = scalar_lea.vmem %s9, %s333
      %v335 = vld [vmem:[%s329] sm:$0xff]
      %v336 = vld [vmem:[%s329 + $0x8] sm:$0xff]
      %v337 = vld [vmem:[%s329 + $0x10] sm:$0xff]
      %v338 = vld [vmem:[%s329 + $0x18] sm:$0xff]
      %v339 = vld [vmem:[%s329 + $0x20] sm:$0xff]
      %v340 = vld [vmem:[%s329 + $0x28] sm:$0xff]
      %v341 = vld [vmem:[%s329 + $0x30] sm:$0xff]
      %v342 = vld [vmem:[%s329 + $0x38] sm:$0xff]
      %v343 = vld [vmem:[%s329 + $0x40] sm:$0xff]
      %v344 = vld [vmem:[%s329 + $0x48] sm:$0xff]
      %v345 = vld [vmem:[%s329 + $0x50] sm:$0xff]
      %v346 = vld [vmem:[%s329 + $0x58] sm:$0xff]
      %v347 = vld [vmem:[%s329 + $0x60] sm:$0xff]
      %v348 = vld [vmem:[%s329 + $0x68] sm:$0xff]
      %v349 = vld [vmem:[%s329 + $0x70] sm:$0xff]
      %v350 = vld [vmem:[%s329 + $0x78] sm:$0xff]
      %v351 = vld [vmem:[%s1] sm:$0x1]
      %v352 = vld [vmem:[#allocation2] sm:$0x1]
      %354 = vset.pattern.permute.xlu0 0
      %355 = vperm.xlu0 %354, %v352
      %v356 = vpop.permute.xlu0 %355
      %v358 = vlaneseq
      %v359 = vshrl.u32 %v358, 7
      %v360 = vsub.s32 0, %v359
      %v361 = vrot.slane %v356, %v360
      %vm362 = vcmask 523264
      %v364 = vsel %vm362, %v351, 0
      %366 = vmatprep.subr.mxu0 %v336
      %367 = vmatpush1.msra.mxu0 %v335
      %368 = vmatprep.subr.mxu0 %v338
      %369 = vmatpush1.msra.mxu0 %v337
      %370 = vmatprep.subr.mxu0 %v340
      %371 = vmatpush1.msra.mxu0 %v339
      %372 = vmatprep.subr.mxu0 %v342
      %373 = vmatpush1.msra.mxu0 %v341
      %374 = vmatprep.subr.mxu0 %v344
      %375 = vmatpush1.msra.mxu0 %v343
      %376 = vmatprep.subr.mxu0 %v346
      %377 = vmatpush1.msra.mxu0 %v345
      %378 = vmatprep.subr.mxu0 %v348
      %379 = vmatpush1.msra.mxu0 %v347
      %380 = vmatprep.subr.mxu0 %v350
      %381 = vmatpush1.msra.mxu0 %v349
      %382 = vmatprep.subr.mxu0 0.0
      %383 = vmatpush1.msra.mxu0 0.0
      %384 = vmatprep.subr.mxu0 0.0
      %385 = vmatpush1.msra.mxu0 0.0
      %386 = vmatprep.subr.mxu0 0.0
      %387 = vmatpush1.msra.mxu0 0.0
      %388 = vmatprep.subr.mxu0 0.0
      %389 = vmatpush1.msra.mxu0 0.0
      %390 = vmatprep.subr.mxu0 0.0
      %391 = vmatpush1.msra.mxu0 0.0
      %392 = vmatprep.subr.mxu0 0.0
      %393 = vmatpush1.msra.mxu0 0.0
      %394 = vmatprep.subr.mxu0 0.0
      %395 = vmatpush1.msra.mxu0 0.0
      %396 = vmatprep.subr.mxu0 0.0
      %397 = vmatpush1.msra.mxu0 0.0
      %398 = vmatprep.subr.mxu0 0.0
      %399 = vmatpush1.msra.mxu0 0.0
      %400 = vmatprep.subr.mxu0 0.0
      %401 = vmatpush1.msra.mxu0 0.0
      %402 = vmatprep.subr.mxu0 0.0
      %403 = vmatpush1.msra.mxu0 0.0
      %404 = vmatprep.subr.mxu0 0.0
      %405 = vmatpush1.msra.mxu0 0.0
      %406 = vmatprep.subr.mxu0 0.0
      %407 = vmatpush1.msra.mxu0 0.0
      %408 = vmatprep.subr.mxu0 0.0
      %409 = vmatpush1.msra.mxu0 0.0
      %410 = vmatprep.subr.mxu0 0.0
      %411 = vmatpush1.msra.mxu0 0.0
      %412 = vmatprep.subr.mxu0 0.0
      %413 = vmatpush1.msra.mxu0 0.0
      %414 = vmatprep.subr.mxu0 0.0
      %415 = vmatpush1.msra.mxu0 0.0
      %416 = vmatprep.subr.mxu0 0.0
      %417 = vmatpush1.msra.mxu0 0.0
      %418 = vmatprep.subr.mxu0 0.0
      %419 = vmatpush1.msra.mxu0 0.0
      %420 = vmatprep.subr.mxu0 0.0
      %421 = vmatpush1.msra.mxu0 0.0
      %422 = vmatprep.subr.mxu0 0.0
      %423 = vmatpush1.msra.mxu0 0.0
      %424 = vmatprep.subr.mxu0 0.0
      %425 = vmatpush1.msra.mxu0 0.0
      %426 = vmatprep.subr.mxu0 0.0
      %427 = vmatpush1.msra.mxu0 0.0
      %428 = vmatprep.subr.mxu0 0.0
      %429 = vmatpush1.msra.mxu0 0.0
      %430 = vmatprep.mubr.f32.mxu0 0.0
      %431 = vmatmul.mubr.f32.gmra.mrb[0].mxu0 %v364
      %v432 = vpop.f32.mrb[0].mxu0
      %v433 = vadd.f32 %v361, %v432
      %v434 = vpop.f32.mrb[0].mxu0
      %v435 = vadd.f32 %v361, %v434
      %436 = vdwg.mxu0
      %vm437 = vcmask 1040384
      %v438 = vsel %vm437, %v433, -inf
      %v439 = vsel %vm437, %v435, -inf
      %v440 = vmax.f32 %v438, %v439
      %441 = vmax.xlane.f32.xlu0 %v440
      %v442 = vpop.xlane.xlu0 %441
      %v443 = vsub.f32 %v433, %v442
      %v444 = vsub.f32 %v435, %v442
      %v445 = vmul.f32 %v443, 1.442695
      %v446 = vpow.pop %v445
      %v447 = vmul.f32 %v444, 1.442695
      %v448 = vpow.pop %v447
      %v449 = vsel %vm437, %v446, 0.0
      %v450 = vsel %vm437, %v448, 0.0
      %v451 = vadd.f32 %v449, %v450
      %452 = vadd.xlane.f32.xlu0 %v451
      %v453 = vpop.xlane.xlu0 %452
      %v454 = vlaneseq
      %v455 = vshrl.u32 %v454, 7
      %v456 = vsub.s32 0, %v455
      %v457 = vrot.slane %v446, %v456
      %v458 = vlaneseq
      %v459 = vshrl.u32 %v458, 7
      %v460 = vsub.s32 0, %v459
      %v461 = vrot.slane %v448, %v460
      %v462 = vmul.f32 %v335, %v457
      %v463 = vmul.f32 %v336, %v461
      %v464 = vmul.f32 %v337, %v457
      %v465 = vmul.f32 %v338, %v461
      %v466 = vmul.f32 %v339, %v457
      %v467 = vmul.f32 %v340, %v461
      %v468 = vmul.f32 %v341, %v457
      %v469 = vmul.f32 %v342, %v461
      %v470 = vmul.f32 %v343, %v457
      %v471 = vmul.f32 %v344, %v461
      %v472 = vmul.f32 %v345, %v457
      %v473 = vmul.f32 %v346, %v461
      %v474 = vmul.f32 %v347, %v457
      %v475 = vmul.f32 %v348, %v461
      %v476 = vmul.f32 %v349, %v457
      %v477 = vmul.f32 %v350, %v461
      %v478 = vadd.f32 %v462, %v463
      %479 = vadd.xlane.f32.xlu0 %v478
      %v480 = vpop.xlane.xlu0 %479
      %v481 = vadd.f32 %v464, %v465
      %482 = vadd.xlane.f32.xlu0 %v481
      %v483 = vpop.xlane.xlu0 %482
      %v484 = vadd.f32 %v466, %v467
      %485 = vadd.xlane.f32.xlu0 %v484
      %v486 = vpop.xlane.xlu0 %485
      %v487 = vadd.f32 %v468, %v469
      %488 = vadd.xlane.f32.xlu0 %v487
      %v489 = vpop.xlane.xlu0 %488
      %v490 = vadd.f32 %v470, %v471
      %491 = vadd.xlane.f32.xlu0 %v490
      %v492 = vpop.xlane.xlu0 %491
      %v493 = vadd.f32 %v472, %v473
      %494 = vadd.xlane.f32.xlu0 %v493
      %v495 = vpop.xlane.xlu0 %494
      %v496 = vadd.f32 %v474, %v475
      %497 = vadd.xlane.f32.xlu0 %v496
      %v498 = vpop.xlane.xlu0 %497
      %v499 = vadd.f32 %v476, %v477
      %500 = vadd.xlane.f32.xlu0 %v499
      %v501 = vpop.xlane.xlu0 %500
      %v502 = vlaneseq
      %v503 = vshrl.u32 %v502, 7
      %v504 = vsub.s32 0, %v503
      %v505 = vrot.slane %v453, %v504
      %v506 = vrcp.pop %v505
      %v507 = vmul.f32 %v480, %v506
      %v508 = vmul.f32 %v483, %v506
      %v509 = vmul.f32 %v486, %v506
      %v510 = vmul.f32 %v489, %v506
      %v511 = vmul.f32 %v492, %v506
      %v512 = vmul.f32 %v495, %v506
      %v513 = vmul.f32 %v498, %v506
      %v514 = vmul.f32 %v501, %v506
      %v515 = vld [vmem:[%s3] sm:$0xf]
      %v516 = vld [vmem:[%s4] sm:$0xf]
      %v517 = vld [vmem:[%s5] sm:$0xf]
      %v518 = vld [vmem:[%s6] sm:$0xf]
      %v519 = vld [vmem:[%s7] sm:$0xff]
      %v520 = vld [vmem:[%s7 + $0x8] sm:$0xff]
      %v521 = vld [vmem:[%s7 + $0x10] sm:$0xff]
      %v522 = vld [vmem:[%s7 + $0x18] sm:$0xff]
      %v523 = vld [vmem:[%s7 + $0x20] sm:$0xff]
      %v524 = vld [vmem:[%s7 + $0x28] sm:$0xff]
      %v525 = vld [vmem:[%s7 + $0x30] sm:$0xff]
      %v526 = vld [vmem:[%s7 + $0x38] sm:$0xff]
      %v527 = vld [vmem:[%s8] sm:$0xff]
      %v528 = vld [vmem:[%s8 + $0x8] sm:$0xff]
      %v529 = vld [vmem:[%s8 + $0x10] sm:$0xff]
      %v530 = vld [vmem:[%s8 + $0x18] sm:$0xff]
      %v531 = vld [vmem:[%s8 + $0x20] sm:$0xff]
      %v532 = vld [vmem:[%s8 + $0x28] sm:$0xff]
      %v533 = vld [vmem:[%s8 + $0x30] sm:$0xff]
      %v534 = vld [vmem:[%s8 + $0x38] sm:$0xff]
      %v536 = vsel %vm362, %v515, 0
      %538 = vmatprep.subr.mxu0 0.0
      %539 = vmatpush1.msra.mxu0 %v507
      %540 = vmatprep.subr.mxu0 0.0
      %541 = vmatpush1.msra.mxu0 %v508
      %542 = vmatprep.subr.mxu0 0.0
      %543 = vmatpush1.msra.mxu0 %v509
      %544 = vmatprep.subr.mxu0 0.0
      %545 = vmatpush1.msra.mxu0 %v510
      %546 = vmatprep.subr.mxu0 0.0
      %547 = vmatpush1.msra.mxu0 %v511
      %548 = vmatprep.subr.mxu0 0.0
      %549 = vmatpush1.msra.mxu0 %v512
      %550 = vmatprep.subr.mxu0 0.0
      %551 = vmatpush1.msra.mxu0 %v513
      %552 = vmatprep.subr.mxu0 0.0
      %553 = vmatpush1.msra.mxu0 %v514
      %554 = vmatprep.subr.mxu0 0.0
      %555 = vmatpush1.msra.mxu0 0.0
      %556 = vmatprep.subr.mxu0 0.0
      %557 = vmatpush1.msra.mxu0 0.0
      %558 = vmatprep.subr.mxu0 0.0
      %559 = vmatpush1.msra.mxu0 0.0
      %560 = vmatprep.subr.mxu0 0.0
      %561 = vmatpush1.msra.mxu0 0.0
      %562 = vmatprep.subr.mxu0 0.0
      %563 = vmatpush1.msra.mxu0 0.0
      %564 = vmatprep.subr.mxu0 0.0
      %565 = vmatpush1.msra.mxu0 0.0
      %566 = vmatprep.subr.mxu0 0.0
      %567 = vmatpush1.msra.mxu0 0.0
      %568 = vmatprep.subr.mxu0 0.0
      %569 = vmatpush1.msra.mxu0 0.0
      %570 = vmatprep.subr.mxu0 0.0
      %571 = vmatpush1.msra.mxu0 0.0
      %572 = vmatprep.subr.mxu0 0.0
      %573 = vmatpush1.msra.mxu0 0.0
      %574 = vmatprep.subr.mxu0 0.0
      %575 = vmatpush1.msra.mxu0 0.0
      %576 = vmatprep.subr.mxu0 0.0
      %577 = vmatpush1.msra.mxu0 0.0
      %578 = vmatprep.subr.mxu0 0.0
      %579 = vmatpush1.msra.mxu0 0.0
      %580 = vmatprep.subr.mxu0 0.0
      %581 = vmatpush1.msra.mxu0 0.0
      %582 = vmatprep.subr.mxu0 0.0
      %583 = vmatpush1.msra.mxu0 0.0
      %584 = vmatprep.subr.mxu0 0.0
      %585 = vmatpush1.msra.mxu0 0.0
      %586 = vmatprep.subr.mxu0 0.0
      %587 = vmatpush1.msra.mxu0 0.0
      %588 = vmatprep.subr.mxu0 0.0
      %589 = vmatpush1.msra.mxu0 0.0
      %590 = vmatprep.subr.mxu0 0.0
      %591 = vmatpush1.msra.mxu0 0.0
      %592 = vmatprep.subr.mxu0 0.0
      %593 = vmatpush1.msra.mxu0 0.0
      %594 = vmatprep.subr.mxu0 0.0
      %595 = vmatpush1.msra.mxu0 0.0
      %596 = vmatprep.subr.mxu0 0.0
      %597 = vmatpush1.msra.mxu0 0.0
      %598 = vmatprep.subr.mxu0 0.0
      %599 = vmatpush1.msra.mxu0 0.0
      %600 = vmatprep.subr.mxu0 0.0
      %601 = vmatpush1.msra.mxu0 0.0
      %602 = vmatprep.mubr.f32.mxu0 0.0
      %603 = vmatmul.mubr.f32.gmra.mrb[0].mxu0 %v536
      %v604 = vpop.f32.mrb[0].mxu0
      %v605 = vadd.f32 %v516, %v604
      %v606 = vpop.f32.mrb[0].mxu0
      %607 = vdwg.mxu0
      %vm608 = vcmask 3072
      %v609 = vsel %vm608, %v605, 0.0
      %v610 = vrot.slane %v609, 4
      %v611 = vadd.f32 %v609, %v610
      %v612 = vrot.slane %v611, 2
      %v613 = vadd.f32 %v611, %v612
      %v614 = vrot.slane %v613, 1
      %v615 = vadd.f32 %v613, %v614
      %v616 = vrcp.pop 4.0
      %v617 = vmul.f32 %v615, %v616
      %v618 = vsub.f32 %v605, %v617
      %v619 = vmul.f32 %v618, %v618
      %v620 = vsel %vm608, %v619, 0.0
      %v621 = vrot.slane %v620, 4
      %v622 = vadd.f32 %v620, %v621
      %v623 = vrot.slane %v622, 2
      %v624 = vadd.f32 %v622, %v623
      %v625 = vrot.slane %v624, 1
      %v626 = vadd.f32 %v624, %v625
      %v627 = vmul.f32 %v626, %v616
      %v628 = vadd.f32 %v627, 1e-05
      %v629 = vrsqrt.pop %v628
      %v630 = vmul.f32 %v618, %v629
      %v631 = vmul.f32 %v630, %v517
      %v632 = vadd.f32 %v631, %v518
      %v633 = vmax.f32 %v632, 0.0
      %vm634 = vcmask 31744
      %v636 = vsel %vm634, %v519, 0
      %v639 = vsel %vm634, %v520, 0
      %v642 = vsel %vm634, %v521, 0
      %v645 = vsel %vm634, %v522, 0
      %v648 = vsel %vm634, %v523, 0
      %v651 = vsel %vm634, %v524, 0
      %v654 = vsel %vm634, %v525, 0
      %v657 = vsel %vm634, %v526, 0
      %vm659 = vcmask 1043456
      %v661 = vsel %vm659, %v633, 0
      %663 = vmatprep.subr.mxu0 0.0
      %664 = vmatpush1.msra.mxu0 %v661
      %665 = vmatprep.subr.mxu0 0.0
      %666 = vmatpush1.msra.mxu0 0.0
      %667 = vmatprep.subr.mxu0 0.0
      %668 = vmatpush1.msra.mxu0 0.0
      %669 = vmatprep.subr.mxu0 0.0
      %670 = vmatpush1.msra.mxu0 0.0
      %671 = vmatprep.subr.mxu0 0.0
      %672 = vmatpush1.msra.mxu0 0.0
      %673 = vmatprep.subr.mxu0 0.0
      %674 = vmatpush1.msra.mxu0 0.0
      %675 = vmatprep.subr.mxu0 0.0
      %676 = vmatpush1.msra.mxu0 0.0
      %677 = vmatprep.subr.mxu0 0.0
      %678 = vmatpush1.msra.mxu0 0.0
      %679 = vmatprep.subr.mxu0 0.0
      %680 = vmatpush1.msra.mxu0 0.0
      %681 = vmatprep.subr.mxu0 0.0
      %682 = vmatpush1.msra.mxu0 0.0
      %683 = vmatprep.subr.mxu0 0.0
      %684 = vmatpush1.msra.mxu0 0.0
      %685 = vmatprep.subr.mxu0 0.0
      %686 = vmatpush1.msra.mxu0 0.0
      %687 = vmatprep.subr.mxu0 0.0
      %688 = vmatpush1.msra.mxu0 0.0
      %689 = vmatprep.subr.mxu0 0.0
      %690 = vmatpush1.msra.mxu0 0.0
      %691 = vmatprep.subr.mxu0 0.0
      %692 = vmatpush1.msra.mxu0 0.0
      %693 = vmatprep.subr.mxu0 0.0
      %694 = vmatpush1.msra.mxu0 0.0
      %695 = vmatprep.subr.mxu0 0.0
      %696 = vmatpush1.msra.mxu0 0.0
      %697 = vmatprep.subr.mxu0 0.0
      %698 = vmatpush1.msra.mxu0 0.0
      %699 = vmatprep.subr.mxu0 0.0
      %700 = vmatpush1.msra.mxu0 0.0
      %701 = vmatprep.subr.mxu0 0.0
      %702 = vmatpush1.msra.mxu0 0.0
      %703 = vmatprep.subr.mxu0 0.0
      %704 = vmatpush1.msra.mxu0 0.0
      %705 = vmatprep.subr.mxu0 0.0
      %706 = vmatpush1.msra.mxu0 0.0
      %707 = vmatprep.subr.mxu0 0.0
      %708 = vmatpush1.msra.mxu0 0.0
      %709 = vmatprep.subr.mxu0 0.0
      %710 = vmatpush1.msra.mxu0 0.0
      %711 = vmatprep.subr.mxu0 0.0
      %712 = vmatpush1.msra.mxu0 0.0
      %713 = vmatprep.subr.mxu0 0.0
      %714 = vmatpush1.msra.mxu0 0.0
      %715 = vmatprep.subr.mxu0 0.0
      %716 = vmatpush1.msra.mxu0 0.0
      %717 = vmatprep.subr.mxu0 0.0
      %718 = vmatpush1.msra.mxu0 0.0
      %719 = vmatprep.subr.mxu0 0.0
      %720 = vmatpush1.msra.mxu0 0.0
      %721 = vmatprep.subr.mxu0 0.0
      %722 = vmatpush1.msra.mxu0 0.0
      %723 = vmatprep.subr.mxu0 0.0
      %724 = vmatpush1.msra.mxu0 0.0
      %725 = vmatprep.subr.mxu0 0.0
      %726 = vmatpush1.msra.mxu0 0.0
      %727 = vmatprep.mubr.f32.mxu0 0.0
      %728 = vmatmul.mubr.f32.gmra.mrb[0].mxu0 %v636
      %v729 = vpop.f32.mrb[0].mxu0
      %v730 = vadd.f32 %v527, %v729
      %v731 = vpop.f32.mrb[0].mxu0
      %732 = vmatprep.mubr.f32.mxu0 0.0
      %733 = vmatmul.mubr.f32.gmra.mrb[0].mxu0 %v639
      %v734 = vpop.f32.mrb[0].mxu0
      %v735 = vadd.f32 %v528, %v734
      %v736 = vpop.f32.mrb[0].mxu0
      %737 = vmatprep.mubr.f32.mxu0 0.0
      %738 = vmatmul.mubr.f32.gmra.mrb[0].mxu0 %v642
      %v739 = vpop.f32.mrb[0].mxu0
      %v740 = vadd.f32 %v529, %v739
      %v741 = vpop.f32.mrb[0].mxu0
      %742 = vmatprep.mubr.f32.mxu0 0.0
      %743 = vmatmul.mubr.f32.gmra.mrb[0].mxu0 %v645
      %v744 = vpop.f32.mrb[0].mxu0
      %v745 = vadd.f32 %v530, %v744
      %v746 = vpop.f32.mrb[0].mxu0
      %747 = vmatprep.mubr.f32.mxu0 0.0
      %748 = vmatmul.mubr.f32.gmra.mrb[0].mxu0 %v648
      %v749 = vpop.f32.mrb[0].mxu0
      %v750 = vadd.f32 %v531, %v749
      %v751 = vpop.f32.mrb[0].mxu0
      %752 = vmatprep.mubr.f32.mxu0 0.0
      %753 = vmatmul.mubr.f32.gmra.mrb[0].mxu0 %v651
      %v754 = vpop.f32.mrb[0].mxu0
      %v755 = vadd.f32 %v532, %v754
      %v756 = vpop.f32.mrb[0].mxu0
      %757 = vmatprep.mubr.f32.mxu0 0.0
      %758 = vmatmul.mubr.f32.gmra.mrb[0].mxu0 %v654
      %v759 = vpop.f32.mrb[0].mxu0
      %v760 = vadd.f32 %v533, %v759
      %v761 = vpop.f32.mrb[0].mxu0
      %762 = vmatprep.mubr.f32.mxu0 0.0
      %763 = vmatmul.mubr.f32.gmra.mrb[0].mxu0 %v657
      %v764 = vpop.f32.mrb[0].mxu0
      %v765 = vadd.f32 %v534, %v764
      %v766 = vpop.f32.mrb[0].mxu0
      %767 = vdwg.mxu0
      %769 = vset.pattern.permute.xlu0 0
      %770 = vperm.xlu0 %769, %v730
      %v771 = vpop.permute.xlu0 %770
      %774 = vset.pattern.permute.xlu0 0
      %775 = vperm.xlu0 %774, %v735
      %v776 = vpop.permute.xlu0 %775
      %779 = vset.pattern.permute.xlu0 0
      %780 = vperm.xlu0 %779, %v740
      %v781 = vpop.permute.xlu0 %780
      %784 = vset.pattern.permute.xlu0 0
      %785 = vperm.xlu0 %784, %v745
      %v786 = vpop.permute.xlu0 %785
      %789 = vset.pattern.permute.xlu0 0
      %790 = vperm.xlu0 %789, %v750
      %v791 = vpop.permute.xlu0 %790
      %794 = vset.pattern.permute.xlu0 0
      %795 = vperm.xlu0 %794, %v755
      %v796 = vpop.permute.xlu0 %795
      %799 = vset.pattern.permute.xlu0 0
      %800 = vperm.xlu0 %799, %v760
      %v801 = vpop.permute.xlu0 %800
      %804 = vset.pattern.permute.xlu0 0
      %805 = vperm.xlu0 %804, %v765
      %v806 = vpop.permute.xlu0 %805
      %v808 = vadd.f32 %v335, %v771
      %v809 = vadd.f32 %v336, %v771
      %v810 = vadd.f32 %v337, %v776
      %v811 = vadd.f32 %v338, %v776
      %v812 = vadd.f32 %v339, %v781
      %v813 = vadd.f32 %v340, %v781
      %v814 = vadd.f32 %v341, %v786
      %v815 = vadd.f32 %v342, %v786
      %v816 = vadd.f32 %v343, %v791
      %v817 = vadd.f32 %v344, %v791
      %v818 = vadd.f32 %v345, %v796
      %v819 = vadd.f32 %v346, %v796
      %v820 = vadd.f32 %v347, %v801
      %v821 = vadd.f32 %v348, %v801
      %v822 = vadd.f32 %v349, %v806
      %v823 = vadd.f32 %v350, %v806
      %824 = vst [vmem:[%s334] sm:$0xff] %v808
      %825 = vst [vmem:[%s334 + $0x8] sm:$0xff] %v809
      %826 = vst [vmem:[%s334 + $0x10] sm:$0xff] %v810
      %827 = vst [vmem:[%s334 + $0x18] sm:$0xff] %v811
      %828 = vst [vmem:[%s334 + $0x20] sm:$0xff] %v812
      %829 = vst [vmem:[%s334 + $0x28] sm:$0xff] %v813
      %830 = vst [vmem:[%s334 + $0x30] sm:$0xff] %v814
      %831 = vst [vmem:[%s334 + $0x38] sm:$0xff] %v815
      %832 = vst [vmem:[%s334 + $0x40] sm:$0xff] %v816
      %833 = vst [vmem:[%s334 + $0x48] sm:$0xff] %v817
      %834 = vst [vmem:[%s334 + $0x50] sm:$0xff] %v818
      %835 = vst [vmem:[%s334 + $0x58] sm:$0xff] %v819
      %836 = vst [vmem:[%s334 + $0x60] sm:$0xff] %v820
      %837 = vst [vmem:[%s334 + $0x68] sm:$0xff] %v821
      %838 = vst [vmem:[%s334 + $0x70] sm:$0xff] %v822
      %839 = vst [vmem:[%s334 + $0x78] sm:$0xff] %v823
      %p840 = scmp.lt.s32.totalorder %s22, 1
      %s841 = scalar_select %p840, %s22, 1
      %s842 = smul.addr %s841, 16
      %s843 = smul.addr %s842, 8
      %s844 = scalar_lea.vmem %s9, %s843
      // Predicated region
      $region57: #{global_context_block.1} parent=55 // pred_check
        %p845 = pneg %p234
      $region58: #{global_context_block.1} parent=55 // pred_check_branch
        %847 = sbr.rel (%p845) target = $region60
      $region59: #{global_context_block.1} parent=55 // pred_region
        _
      $region60: #{global_context_block.1} parent=55 // pred_fallthru
        _
    $region56: #{global_context_block.1} parent=5 // pred_fallthru
      _
    %p848 = scmp.le.s32.totalorder 2, %s17
    // Predicated region
    $region61: #{global_context_block.1} parent=5 // pred_check
      %p849 = pneg %p848
    $region62: #{global_context_block.1} parent=5 // pred_check_branch
      %851 = sbr.rel (%p849) target = $region64
    $region63: #{global_context_block.1} parent=5 // pred_region
      %s852 = ssub.s32 %s17, 2
      // Predicated region
      $region65: #{global_context_block.1} parent=63 // pred_check
        %p853 = pneg %p240
      $region66: #{global_context_block.1} parent=63 // pred_check_branch
        %855 = sbr.rel (%p853) target = $region68
      $region67: #{global_context_block.1} parent=63 // pred_region
        %p856 = scmp.lt.s32.totalorder %s23, 1
        %s857 = scalar_select %p856, %s23, 1
        %s858 = smul.addr %s857, 16
        %s859 = smul.addr %s858, 8
        %s860 = scalar_lea.vmem %s9, %s859
      $region68: #{global_context_block.1} parent=63 // pred_fallthru
        _
    $region64: #{global_context_block.1} parent=5 // pred_fallthru
      _
  $region6: #{global_context_block.1} parent=0 // loop_footer
    %s21 = sadd.s32 1, %s17
  $region7: #{global_context_block.1} parent=0 // loop_footer_branch
    %16 = sbr.rel target = $region3
  $region8: #{global_context_block.1} parent=0 // loop_exit
    _

</llo_original>
